<compile_context>
chip_gen: v7x
topology: tpu7x:2x2x1
jax: 0.10.0
libtpu: 0.0.40
codegen_flags: <defaults>
</compile_context>

<pallas_src>
import functools

import jax
import jax.numpy as jnp
from jax.experimental import pallas as pl
from jax.experimental.pallas import tpu as pltpu


def _round_up(x, m):
    return -(-x // m) * m


def relation_kernel(x1_ref, x2_ref, w1_ref, b1_ref, w2_ref, b2_ref, o_ref):
    d = x1_ref.shape[1]
    # fc1 as a split matmul (== cat([x1, x2], -1) @ W1); f32 accumulation on MXU.
    h = jnp.dot(x1_ref[...], w1_ref[:d, :], preferred_element_type=jnp.float32)
    h = h + jnp.dot(x2_ref[...], w1_ref[d:, :], preferred_element_type=jnp.float32)
    h = jnp.maximum(h + b1_ref[...], 0.0)                      # bias + ReLU in f32
    # fc2 on the MXU (K=d, N=1) -- keeps the XLU / store slots free at small D.
    out = jnp.dot(h, w2_ref[...], preferred_element_type=jnp.float32)
    o_ref[...] = (out + b2_ref[0]).astype(o_ref.dtype)


@functools.partial(jax.jit, static_argnames=("tile_b",))
def relation_module(x1, x2, w1, b1, w2, b2, *, tile_b=None):
    """x1, x2: [B, D]; w1: [2D, D]; b1: [D]; w2: [D, 1]; b2: [1] -> [B, 1].

    Weights are stored [in_features, out_features] (PyTorch weight transposed),
    so the module computes x @ W + b.  Numerics follow the input dtype: f32
    inputs reproduce the exact f32 PyTorch forward; pass bf16 inputs/weights to
    opt in to reduced precision (no silent casts are done here).
    """
    B, D = x1.shape
    assert x2.shape == (B, D)
    assert w1.shape == (2 * D, D) and b1.shape == (D,)
    assert w2.shape == (D, 1) and b2.shape == (1,)

    out_dtype = x1.dtype
    in_itemsize = jnp.dtype(x1.dtype).itemsize
    w_itemsize = jnp.dtype(w1.dtype).itemsize

    lane = 128
    lane_d = _round_up(D, lane)        # VMEM lane padding of the D axis
    sub_d = _round_up(D, 8)

    # ---- VMEM footprint of the resident operands (default 2x buffering). ----
    weight_vmem = (2 * (2 * D) * lane_d * w_itemsize       # W1 (2D, D)
                   + 2 * 8 * lane_d * 4                     # b1 as (1, D)
                   + 2 * sub_d * lane * 4)                  # w2 as (D, 1)

    # ---- Batch tile selection. ----------------------------------------------
    if tile_b is None:
        # ~4 MiB of x1+x2 per grid step so the ~0.35us/step overhead is amortised.
        tb = max((4 << 20) // max(2 * D * in_itemsize, 1), 1024)
        # VMEM cap: streamed buffers (x1, x2 tiles + lane-padded (TB,1) out), 2x buffered.
        per_row = 2 * 2 * lane_d * in_itemsize + 2 * lane * 4
        budget = max((28 << 20) - weight_vmem, 4 << 20)
        tb = min(tb, max(budget // per_row, 8))
        # v7x megacore: guarantee >= 2 batch tiles once B is big enough.
        if B >= 512:
            tb = min(tb, -(-B // 2))
    else:
        tb = tile_b

    tb = min(tb, B)
    if tb < B:
        tb = _round_up(tb, 8)          # ragged grid => block must be sublane-aligned
        if tb >= B:
            tb = B                     # full-array block is always legal

    grid = (pl.cdiv(B, tb),)

    # ---- Explicit scoped-VMEM limit (raise v5e's 16 MiB default if needed). --
    vmem_need = (weight_vmem
                 + 2 * 2 * tb * lane_d * in_itemsize        # x1, x2 tiles
                 + 2 * _round_up(tb, 8) * lane * 4)         # (tb, 1) out block
    vmem_limit = int(min(max(1.5 * vmem_need + (4 << 20), 32 << 20), 100 << 20))

    cost = pl.CostEstimate(
        flops=4 * B * D * D + 2 * B * D + 2 * B * D + 2 * B,
        transcendentals=0,
        bytes_accessed=(2 * B * D * in_itemsize             # x1, x2
                        + 2 * D * D * w_itemsize            # W1
                        + (2 * D + 1) * 4                   # b1, w2, b2
                        + B * jnp.dtype(out_dtype).itemsize),
    )

    # Tiny (O(D)) reshapes/casts only -- no per-element wrapper passes over x1/x2.
    b1_2d = b1.reshape(1, D).astype(jnp.float32)
    w2_f32 = w2.astype(jnp.float32)
    b2_f32 = b2.astype(jnp.float32)

    out = pl.pallas_call(
        relation_kernel,
        out_shape=jax.ShapeDtypeStruct((B, 1), out_dtype),
        grid=grid,
        in_specs=[
            pl.BlockSpec((tb, D), lambda i: (i, 0)),            # x1 tile (streamed)
            pl.BlockSpec((tb, D), lambda i: (i, 0)),            # x2 tile (streamed)
            pl.BlockSpec((2 * D, D), lambda i: (0, 0)),         # W1 (resident)
            pl.BlockSpec((1, D), lambda i: (0, 0)),             # b1 (resident)
            pl.BlockSpec((D, 1), lambda i: (0, 0)),             # w2 (resident)
            pl.BlockSpec(memory_space=pltpu.MemorySpace.SMEM),  # b2 scalar
        ],
        out_specs=pl.BlockSpec((tb, 1), lambda i: (i, 0)),
        compiler_params=pltpu.CompilerParams(
            dimension_semantics=("parallel",),                  # megacore split on v7x
            vmem_limit_bytes=vmem_limit,
        ),
        cost_estimate=cost,
    )(x1, x2, w1, b1_2d, w2_f32, b2_f32)

    return out


if __name__ == "__main__":
    B = 8          # batch
    D = 32         # input_dim

    key = jax.random.PRNGKey(0)
    k_x1, k_x2, k_w1, k_b1, k_w2, k_b2 = jax.random.split(key, 6)

    x1 = jax.random.normal(k_x1, (B, D), dtype=jnp.float32)
    x2 = jax.random.normal(k_x2, (B, D), dtype=jnp.float32)

    # fc1: Linear(2D -> D), fc2: Linear(D -> 1); stored [in, out].
    w1 = jax.random.normal(k_w1, (2 * D, D), dtype=jnp.float32) * 0.1
    b1 = jax.random.normal(k_b1, (D,), dtype=jnp.float32) * 0.1
    w2 = jax.random.normal(k_w2, (D, 1), dtype=jnp.float32) * 0.1
    b2 = jax.random.normal(k_b2, (1,), dtype=jnp.float32) * 0.1

    out = jax.block_until_ready(relation_module(x1, x2, w1, b1, w2, b2))
    assert out.shape == (B, 1), out.shape

    ref = jnp.maximum(jnp.concatenate([x1, x2], axis=1) @ w1 + b1, 0.0) @ w2 + b2
    assert jnp.allclose(out, ref, atol=1e-4, rtol=1e-4), "single-tile path mismatch"

    # Exercise the multi-tile + ragged-edge path (grid = cdiv(40, 16) = 3).
    B2 = 40
    ky1, ky2 = jax.random.split(jax.random.PRNGKey(1), 2)
    y1 = jax.random.normal(ky1, (B2, D), dtype=jnp.float32)
    y2 = jax.random.normal(ky2, (B2, D), dtype=jnp.float32)
    out2 = jax.block_until_ready(relation_module(y1, y2, w1, b1, w2, b2, tile_b=16))
    ref2 = jnp.maximum(jnp.concatenate([y1, y2], axis=1) @ w1 + b1, 0.0) @ w2 + b2
    assert out2.shape == (B2, 1), out2.shape
    assert jnp.allclose(out2, ref2, atol=1e-4, rtol=1e-4), "tiled ragged path mismatch"

    print("KERNEL_OK")
</pallas_src>

<mosaic_0001>
module attributes {stable_mosaic.version = 11 : i64} {
  func.func @relation_kernel(%arg0: i32, %arg1: memref<8x32xf32, #tpu.memory_space<vmem>>, %arg2: memref<8x32xf32, #tpu.memory_space<vmem>>, %arg3: memref<64x32xf32, #tpu.memory_space<vmem>>, %arg4: memref<1x32xf32, #tpu.memory_space<vmem>>, %arg5: memref<32x1xf32, #tpu.memory_space<vmem>>, %arg6: memref<1xf32, #tpu.memory_space<smem>>, %arg7: memref<8x1xf32, #tpu.memory_space<vmem>>) attributes {dimension_semantics = [#tpu.dimension_semantics<parallel>], iteration_bounds = array<i64: 1>, scalar_prefetch = 0 : i64, scratch_operands = 0 : i64, tpu.core_type = #tpu.core_type<tc>, window_params = [{transform_indices = @transform_0, window_bounds = array<i64: 8, 32>}, {transform_indices = @transform_1, window_bounds = array<i64: 8, 32>}, {pipeline_mode = #tpu.pipeline_mode<synchronous>, transform_indices = @transform_2, window_bounds = array<i64: 64, 32>}, {pipeline_mode = #tpu.pipeline_mode<synchronous>, transform_indices = @transform_3, window_bounds = array<i64: 1, 32>}, {pipeline_mode = #tpu.pipeline_mode<synchronous>, transform_indices = @transform_4, window_bounds = array<i64: 32, 1>}, {transform_indices = @transform_5, window_bounds = array<i64: 1>}, {transform_indices = @transform_6, window_bounds = array<i64: 8, 1>}]} {
    %c0 = arith.constant 0 : index
    %c0_0 = arith.constant 0 : index
    %0 = vector.load %arg1[%c0, %c0_0] : memref<8x32xf32, #tpu.memory_space<vmem>>, vector<8x32xf32>
    %c0_1 = arith.constant 0 : index
    %c0_2 = arith.constant 0 : index
    %1 = vector.load %arg3[%c0_1, %c0_2] : memref<64x32xf32, #tpu.memory_space<vmem>>, vector<32x32xf32>
    %cst = arith.constant dense<0.000000e+00> : vector<8x32xf32>
    %2 = tpu.matmul %0, %1, %cst {dimension_numbers = #tpu.dot_dimension_numbers<[1], [0], [0], [1], [0, 0, 1, 1], [], []>} : vector<8x32xf32>, vector<32x32xf32>, vector<8x32xf32> -> vector<8x32xf32>
    %c0_3 = arith.constant 0 : index
    %c0_4 = arith.constant 0 : index
    %3 = vector.load %arg2[%c0_3, %c0_4] : memref<8x32xf32, #tpu.memory_space<vmem>>, vector<8x32xf32>
    %c32 = arith.constant 32 : index
    %c0_5 = arith.constant 0 : index
    %4 = vector.load %arg3[%c32, %c0_5] : memref<64x32xf32, #tpu.memory_space<vmem>>, vector<32x32xf32>
    %cst_6 = arith.constant dense<0.000000e+00> : vector<8x32xf32>
    %5 = tpu.matmul %3, %4, %cst_6 {dimension_numbers = #tpu.dot_dimension_numbers<[1], [0], [0], [1], [0, 0, 1, 1], [], []>} : vector<8x32xf32>, vector<32x32xf32>, vector<8x32xf32> -> vector<8x32xf32>
    %6 = arith.addf %2, %5 : vector<8x32xf32>
    %c0_7 = arith.constant 0 : index
    %c0_8 = arith.constant 0 : index
    %7 = vector.load %arg4[%c0_7, %c0_8] : memref<1x32xf32, #tpu.memory_space<vmem>>, vector<1x32xf32>
    %8 = vector.broadcast %7 : vector<1x32xf32> to vector<8x32xf32>
    %9 = arith.addf %6, %8 : vector<8x32xf32>
    %cst_9 = arith.constant 0.000000e+00 : f32
    %10 = vector.broadcast %cst_9 : f32 to vector<8x32xf32>
    %11 = arith.maximumf %9, %10 : vector<8x32xf32>
    %c0_10 = arith.constant 0 : index
    %c0_11 = arith.constant 0 : index
    %12 = vector.load %arg5[%c0_10, %c0_11] : memref<32x1xf32, #tpu.memory_space<vmem>>, vector<32x1xf32>
    %cst_12 = arith.constant dense<0.000000e+00> : vector<8x1xf32>
    %13 = tpu.matmul %11, %12, %cst_12 {dimension_numbers = #tpu.dot_dimension_numbers<[1], [0], [0], [1], [0, 0, 1, 1], [], []>} : vector<8x32xf32>, vector<32x1xf32>, vector<8x1xf32> -> vector<8x1xf32>
    %c0_13 = arith.constant 0 : index
    %14 = memref.load %arg6[%c0_13] : memref<1xf32, #tpu.memory_space<smem>>
    %15 = vector.broadcast %14 : f32 to vector<8x1xf32>
    %16 = arith.addf %13, %15 : vector<8x1xf32>
    %c0_14 = arith.constant 0 : index
    %c0_15 = arith.constant 0 : index
    %17 = vector.load %arg7[%c0_14, %c0_15] : memref<8x1xf32, #tpu.memory_space<vmem>>, vector<8x1xf32>
    tpu.vector_store %arg7[%c0_14, %c0_15], %16 {strides = array<i32>} : memref<8x1xf32, #tpu.memory_space<vmem>>, vector<8x1xf32>,
    return
  }
  func.func @transform_0(%arg0: i32) -> (i32, i32) {
    %c0_i32 = arith.constant 0 : i32
    %c0_i32_0 = arith.constant 0 : i32
    return %arg0, %c0_i32 : i32, i32
  }
  func.func @transform_1(%arg0: i32) -> (i32, i32) {
    %c0_i32 = arith.constant 0 : i32
    %c0_i32_0 = arith.constant 0 : i32
    return %arg0, %c0_i32 : i32, i32
  }
  func.func @transform_2(%arg0: i32) -> (i32, i32) {
    %c0_i32 = arith.constant 0 : i32
    %c0_i32_0 = arith.constant 0 : i32
    %c0_i32_1 = arith.constant 0 : i32
    return %c0_i32, %c0_i32_0 : i32, i32
  }
  func.func @transform_3(%arg0: i32) -> (i32, i32) {
    %c0_i32 = arith.constant 0 : i32
    %c0_i32_0 = arith.constant 0 : i32
    %c0_i32_1 = arith.constant 0 : i32
    return %c0_i32, %c0_i32_0 : i32, i32
  }
  func.func @transform_4(%arg0: i32) -> (i32, i32) {
    %c0_i32 = arith.constant 0 : i32
    %c0_i32_0 = arith.constant 0 : i32
    %c0_i32_1 = arith.constant 0 : i32
    return %c0_i32, %c0_i32_0 : i32, i32
  }
  func.func @transform_5(%arg0: i32) -> i32 {
    %c0_i32 = arith.constant 0 : i32
    %c0_i32_0 = arith.constant 0 : i32
    return %c0_i32 : i32
  }
  func.func @transform_6(%arg0: i32) -> (i32, i32) {
    %c0_i32 = arith.constant 0 : i32
    %c0_i32_0 = arith.constant 0 : i32
    return %arg0, %c0_i32 : i32, i32
  }
}

</mosaic_0001>

<llo_original>
// kernel: relation_module.1
$region0: #{relation_module.1}
  #allocation0 [shape = 'u32[]', space=smem, size = 0x4, offset = 0x4, fixed_abs, tag = 'smem constant byte address 0x4 - core index']
  #allocation1 [shape = 'u32[144,128]{1,0:T(1,128)}', space=vmem, size = 0x12000, scoped, tag = 'internal scratch']
  #allocation2 [shape = 'f32[1]{0:T(128)S(6)}', space=smem, size = 0x200, scoped, tag = 'scoped memory for relation_module.1']
  %s0 = inlined_call_operand.vmem [shape: f32[8,32], index: 0, kind: input, shape index: {}]
  %s1 = inlined_call_operand.vmem [shape: f32[8,32], index: 1, kind: input, shape index: {}]
  %s2 = inlined_call_operand.vmem [shape: f32[64,32], index: 2, kind: input, shape index: {}]
  %s3 = inlined_call_operand.vmem [shape: f32[1,32], index: 3, kind: input, shape index: {}]
  %s4 = inlined_call_operand.vmem [shape: f32[32,1], index: 4, kind: input, shape index: {}]
  %s5 = inlined_call_operand.<no memory space> [shape: f32[1], index: 5, kind: input, shape index: {}]
  %s6 = inlined_call_operand.vmem [shape: f32[8,1], index: 6, kind: output, shape index: {}]
  %s7 = sld [smem:[#allocation0]]
  $region34: #{relation_module.1} parent=0
    _
  %s9 = ssub.s32 1, %s7
  %s10 = scalar_select 0, %s9, %s7
  %11 = sst [smem:[#allocation2]] %s5
  // Predicated region
  $region2: #{relation_module.1} parent=0 // pred_check
    _
  $region3: #{relation_module.1} parent=0 // pred_check_branch
    %13 = sbr.rel (0) target = $region5
  $region4: #{relation_module.1} parent=0 // pred_region
    _
  $region5: #{relation_module.1} parent=0 // pred_fallthru
    _
  // Predicated region
  $region6: #{relation_module.1} parent=0 // pred_check
    _
  $region7: #{relation_module.1} parent=0 // pred_check_branch
    %15 = sbr.rel (0) target = $region9
  $region8: #{relation_module.1} parent=0 // pred_region
    _
  $region9: #{relation_module.1} parent=0 // pred_fallthru
    _
  // Predicated region
  $region10: #{relation_module.1} parent=0 // pred_check
    _
  $region11: #{relation_module.1} parent=0 // pred_check_branch
    %17 = sbr.rel (0) target = $region13
  $region12: #{relation_module.1} parent=0 // pred_region
    _
  $region13: #{relation_module.1} parent=0 // pred_fallthru
    _
  // Predicated region
  $region14: #{relation_module.1} parent=0 // pred_check
    _
  $region15: #{relation_module.1} parent=0 // pred_check_branch
    %19 = sbr.rel (0) target = $region17
  $region16: #{relation_module.1} parent=0 // pred_region
    _
  $region17: #{relation_module.1} parent=0 // pred_fallthru
    _
  // Predicated region
  $region18: #{relation_module.1} parent=0 // pred_check
    _
  $region19: #{relation_module.1} parent=0 // pred_check_branch
    %21 = sbr.rel (0) target = $region21
  $region20: #{relation_module.1} parent=0 // pred_region
    _
  $region21: #{relation_module.1} parent=0 // pred_fallthru
    _
  // Predicated region
  $region22: #{relation_module.1} parent=0 // pred_check
    _
  $region23: #{relation_module.1} parent=0 // pred_check_branch
    %23 = sbr.rel (0) target = $region25
  $region24: #{relation_module.1} parent=0 // pred_region
    _
  $region25: #{relation_module.1} parent=0 // pred_fallthru
    _
  %v24 = vld [vmem:[%s0] sm:$0xff]
  %v25 = vld [vmem:[%s2] sm:$0xff]
  %v26 = vld [vmem:[%s2 + $0x8] sm:$0xff]
  %v27 = vld [vmem:[%s2 + $0x10] sm:$0xff]
  %v28 = vld [vmem:[%s2 + $0x18] sm:$0xff]
  %v29 = vld [vmem:[%s1] sm:$0xff]
  %v30 = vld [vmem:[%s2 + $0x20] sm:$0xff]
  %v31 = vld [vmem:[%s2 + $0x28] sm:$0xff]
  %v32 = vld [vmem:[%s2 + $0x30] sm:$0xff]
  %v33 = vld [vmem:[%s2 + $0x38] sm:$0xff]
  %vm34 = vcmask 261120
  %v36 = vsel %vm34, %v29, 0
  %38 = vmatprep.subr.mxu0 0.0
  %39 = vmatpush1.msra.mxu0 %v30
  %40 = vmatprep.subr.mxu0 0.0
  %41 = vmatpush1.msra.mxu0 %v31
  %42 = vmatprep.subr.mxu0 0.0
  %43 = vmatpush1.msra.mxu0 %v32
  %44 = vmatprep.subr.mxu0 0.0
  %45 = vmatpush1.msra.mxu0 %v33
  %46 = vmatprep.subr.mxu0 0.0
  %47 = vmatpush1.msra.mxu0 0.0
  %48 = vmatprep.subr.mxu0 0.0
  %49 = vmatpush1.msra.mxu0 0.0
  %50 = vmatprep.subr.mxu0 0.0
  %51 = vmatpush1.msra.mxu0 0.0
  %52 = vmatprep.subr.mxu0 0.0
  %53 = vmatpush1.msra.mxu0 0.0
  %54 = vmatprep.subr.mxu0 0.0
  %55 = vmatpush1.msra.mxu0 0.0
  %56 = vmatprep.subr.mxu0 0.0
  %57 = vmatpush1.msra.mxu0 0.0
  %58 = vmatprep.subr.mxu0 0.0
  %59 = vmatpush1.msra.mxu0 0.0
  %60 = vmatprep.subr.mxu0 0.0
  %61 = vmatpush1.msra.mxu0 0.0
  %62 = vmatprep.subr.mxu0 0.0
  %63 = vmatpush1.msra.mxu0 0.0
  %64 = vmatprep.subr.mxu0 0.0
  %65 = vmatpush1.msra.mxu0 0.0
  %66 = vmatprep.subr.mxu0 0.0
  %67 = vmatpush1.msra.mxu0 0.0
  %68 = vmatprep.subr.mxu0 0.0
  %69 = vmatpush1.msra.mxu0 0.0
  %70 = vmatprep.subr.mxu0 0.0
  %71 = vmatpush1.msra.mxu0 0.0
  %72 = vmatprep.subr.mxu0 0.0
  %73 = vmatpush1.msra.mxu0 0.0
  %74 = vmatprep.subr.mxu0 0.0
  %75 = vmatpush1.msra.mxu0 0.0
  %76 = vmatprep.subr.mxu0 0.0
  %77 = vmatpush1.msra.mxu0 0.0
  %78 = vmatprep.subr.mxu0 0.0
  %79 = vmatpush1.msra.mxu0 0.0
  %80 = vmatprep.subr.mxu0 0.0
  %81 = vmatpush1.msra.mxu0 0.0
  %82 = vmatprep.subr.mxu0 0.0
  %83 = vmatpush1.msra.mxu0 0.0
  %84 = vmatprep.subr.mxu0 0.0
  %85 = vmatpush1.msra.mxu0 0.0
  %86 = vmatprep.subr.mxu0 0.0
  %87 = vmatpush1.msra.mxu0 0.0
  %88 = vmatprep.subr.mxu0 0.0
  %89 = vmatpush1.msra.mxu0 0.0
  %90 = vmatprep.subr.mxu0 0.0
  %91 = vmatpush1.msra.mxu0 0.0
  %92 = vmatprep.subr.mxu0 0.0
  %93 = vmatpush1.msra.mxu0 0.0
  %94 = vmatprep.subr.mxu0 0.0
  %95 = vmatpush1.msra.mxu0 0.0
  %96 = vmatprep.subr.mxu0 0.0
  %97 = vmatpush1.msra.mxu0 0.0
  %98 = vmatprep.subr.mxu0 0.0
  %99 = vmatpush1.msra.mxu0 0.0
  %100 = vmatprep.subr.mxu0 0.0
  %101 = vmatpush1.msra.mxu0 0.0
  %102 = vmatprep.mubr.f32.mxu0 0.0
  %103 = vmatmul.mubr.f32.gmra.mrb[0].mxu0 %v36
  %v104 = vpop.f32.mrb[0].mxu0
  %v105 = vadd.f32 0.0, %v104
  %v106 = vpop.f32.mrb[0].mxu0
  %107 = vdwg.mxu0
  %v109 = vsel %vm34, %v24, 0
  %111 = vmatprep.subr.mxu0 0.0
  %112 = vmatpush1.msra.mxu0 %v25
  %113 = vmatprep.subr.mxu0 0.0
  %114 = vmatpush1.msra.mxu0 %v26
  %115 = vmatprep.subr.mxu0 0.0
  %116 = vmatpush1.msra.mxu0 %v27
  %117 = vmatprep.subr.mxu0 0.0
  %118 = vmatpush1.msra.mxu0 %v28
  %119 = vmatprep.subr.mxu0 0.0
  %120 = vmatpush1.msra.mxu0 0.0
  %121 = vmatprep.subr.mxu0 0.0
  %122 = vmatpush1.msra.mxu0 0.0
  %123 = vmatprep.subr.mxu0 0.0
  %124 = vmatpush1.msra.mxu0 0.0
  %125 = vmatprep.subr.mxu0 0.0
  %126 = vmatpush1.msra.mxu0 0.0
  %127 = vmatprep.subr.mxu0 0.0
  %128 = vmatpush1.msra.mxu0 0.0
  %129 = vmatprep.subr.mxu0 0.0
  %130 = vmatpush1.msra.mxu0 0.0
  %131 = vmatprep.subr.mxu0 0.0
  %132 = vmatpush1.msra.mxu0 0.0
  %133 = vmatprep.subr.mxu0 0.0
  %134 = vmatpush1.msra.mxu0 0.0
  %135 = vmatprep.subr.mxu0 0.0
  %136 = vmatpush1.msra.mxu0 0.0
  %137 = vmatprep.subr.mxu0 0.0
  %138 = vmatpush1.msra.mxu0 0.0
  %139 = vmatprep.subr.mxu0 0.0
  %140 = vmatpush1.msra.mxu0 0.0
  %141 = vmatprep.subr.mxu0 0.0
  %142 = vmatpush1.msra.mxu0 0.0
  %143 = vmatprep.subr.mxu0 0.0
  %144 = vmatpush1.msra.mxu0 0.0
  %145 = vmatprep.subr.mxu0 0.0
  %146 = vmatpush1.msra.mxu0 0.0
  %147 = vmatprep.subr.mxu0 0.0
  %148 = vmatpush1.msra.mxu0 0.0
  %149 = vmatprep.subr.mxu0 0.0
  %150 = vmatpush1.msra.mxu0 0.0
  %151 = vmatprep.subr.mxu0 0.0
  %152 = vmatpush1.msra.mxu0 0.0
  %153 = vmatprep.subr.mxu0 0.0
  %154 = vmatpush1.msra.mxu0 0.0
  %155 = vmatprep.subr.mxu0 0.0
  %156 = vmatpush1.msra.mxu0 0.0
  %157 = vmatprep.subr.mxu0 0.0
  %158 = vmatpush1.msra.mxu0 0.0
  %159 = vmatprep.subr.mxu0 0.0
  %160 = vmatpush1.msra.mxu0 0.0
  %161 = vmatprep.subr.mxu0 0.0
  %162 = vmatpush1.msra.mxu0 0.0
  %163 = vmatprep.subr.mxu0 0.0
  %164 = vmatpush1.msra.mxu0 0.0
  %165 = vmatprep.subr.mxu0 0.0
  %166 = vmatpush1.msra.mxu0 0.0
  %167 = vmatprep.subr.mxu0 0.0
  %168 = vmatpush1.msra.mxu0 0.0
  %169 = vmatprep.subr.mxu0 0.0
  %170 = vmatpush1.msra.mxu0 0.0
  %171 = vmatprep.subr.mxu0 0.0
  %172 = vmatpush1.msra.mxu0 0.0
  %173 = vmatprep.subr.mxu0 0.0
  %174 = vmatpush1.msra.mxu0 0.0
  %175 = vmatprep.mubr.f32.mxu0 0.0
  %176 = vmatmul.mubr.f32.gmra.mrb[0].mxu0 %v109
  %v177 = vpop.f32.mrb[0].mxu0
  %v178 = vadd.f32 %v105, %v177
  %v179 = vpop.f32.mrb[0].mxu0
  %180 = vdwg.mxu0
  %v181 = vld [vmem:[%s3] sm:$0x1]
  %v183 = vlaneseq
  %v184 = vshrl.u32 %v183, 7
  %v185 = vsub.s32 0, %v184
  %v186 = vrot.slane %v181, %v185
  %v188 = vadd.f32 %v178, %v186
  %v189 = vmax.f32 %v188, 0.0
  %v190 = vld [vmem:[%s4] sm:$0xff]
  %v191 = vld [vmem:[%s4 + $0x8] sm:$0xff]
  %v192 = vld [vmem:[%s4 + $0x10] sm:$0xff]
  %v193 = vld [vmem:[%s4 + $0x18] sm:$0xff]
  %s194 = sld [smem:[#allocation2]]
  %v195 = vstv %s194
  %v197 = vsel %vm34, %v189, 0
  %199 = vmatprep.subr.mxu0 0.0
  %200 = vmatpush1.msra.mxu0 %v190
  %201 = vmatprep.subr.mxu0 0.0
  %202 = vmatpush1.msra.mxu0 %v191
  %203 = vmatprep.subr.mxu0 0.0
  %204 = vmatpush1.msra.mxu0 %v192
  %205 = vmatprep.subr.mxu0 0.0
  %206 = vmatpush1.msra.mxu0 %v193
  %207 = vmatprep.subr.mxu0 0.0
  %208 = vmatpush1.msra.mxu0 0.0
  %209 = vmatprep.subr.mxu0 0.0
  %210 = vmatpush1.msra.mxu0 0.0
  %211 = vmatprep.subr.mxu0 0.0
  %212 = vmatpush1.msra.mxu0 0.0
  %213 = vmatprep.subr.mxu0 0.0
  %214 = vmatpush1.msra.mxu0 0.0
  %215 = vmatprep.subr.mxu0 0.0
  %216 = vmatpush1.msra.mxu0 0.0
  %217 = vmatprep.subr.mxu0 0.0
  %218 = vmatpush1.msra.mxu0 0.0
  %219 = vmatprep.subr.mxu0 0.0
  %220 = vmatpush1.msra.mxu0 0.0
  %221 = vmatprep.subr.mxu0 0.0
  %222 = vmatpush1.msra.mxu0 0.0
  %223 = vmatprep.subr.mxu0 0.0
  %224 = vmatpush1.msra.mxu0 0.0
  %225 = vmatprep.subr.mxu0 0.0
  %226 = vmatpush1.msra.mxu0 0.0
  %227 = vmatprep.subr.mxu0 0.0
  %228 = vmatpush1.msra.mxu0 0.0
  %229 = vmatprep.subr.mxu0 0.0
  %230 = vmatpush1.msra.mxu0 0.0
  %231 = vmatprep.subr.mxu0 0.0
  %232 = vmatpush1.msra.mxu0 0.0
  %233 = vmatprep.subr.mxu0 0.0
  %234 = vmatpush1.msra.mxu0 0.0
  %235 = vmatprep.subr.mxu0 0.0
  %236 = vmatpush1.msra.mxu0 0.0
  %237 = vmatprep.subr.mxu0 0.0
  %238 = vmatpush1.msra.mxu0 0.0
  %239 = vmatprep.subr.mxu0 0.0
  %240 = vmatpush1.msra.mxu0 0.0
  %241 = vmatprep.subr.mxu0 0.0
  %242 = vmatpush1.msra.mxu0 0.0
  %243 = vmatprep.subr.mxu0 0.0
  %244 = vmatpush1.msra.mxu0 0.0
  %245 = vmatprep.subr.mxu0 0.0
  %246 = vmatpush1.msra.mxu0 0.0
  %247 = vmatprep.subr.mxu0 0.0
  %248 = vmatpush1.msra.mxu0 0.0
  %249 = vmatprep.subr.mxu0 0.0
  %250 = vmatpush1.msra.mxu0 0.0
  %251 = vmatprep.subr.mxu0 0.0
  %252 = vmatpush1.msra.mxu0 0.0
  %253 = vmatprep.subr.mxu0 0.0
  %254 = vmatpush1.msra.mxu0 0.0
  %255 = vmatprep.subr.mxu0 0.0
  %256 = vmatpush1.msra.mxu0 0.0
  %257 = vmatprep.subr.mxu0 0.0
  %258 = vmatpush1.msra.mxu0 0.0
  %259 = vmatprep.subr.mxu0 0.0
  %260 = vmatpush1.msra.mxu0 0.0
  %261 = vmatprep.subr.mxu0 0.0
  %262 = vmatpush1.msra.mxu0 0.0
  %263 = vmatprep.mubr.f32.mxu0 0.0
  %264 = vmatmul.mubr.f32.gmra.mrb[0].mxu0 %v197
  %v265 = vpop.f32.mrb[0].mxu0
  %v266 = vadd.f32 %v195, %v265
  %v267 = vpop.f32.mrb[0].mxu0
  %268 = vdwg.mxu0
  %vm269 = vcmask 7168
  %270 = vst.msk [vmem:[%s6] sm:$0xff] %vm269, %v266
  // Predicated region
  $region26: #{relation_module.1} parent=0 // pred_check
    _
  $region27: #{relation_module.1} parent=0 // pred_check_branch
    %272 = sbr.rel (0) target = $region29
  $region28: #{relation_module.1} parent=0 // pred_region
    _
  $region29: #{relation_module.1} parent=0 // pred_fallthru
    _
  // Predicated region
  $region30: #{relation_module.1} parent=0 // pred_check
    _
  $region31: #{relation_module.1} parent=0 // pred_check_branch
    %274 = sbr.rel (0) target = $region33
  $region32: #{relation_module.1} parent=0 // pred_region
    _
  $region33: #{relation_module.1} parent=0 // pred_fallthru
    _

</llo_original>
